<compile_context>
chip_gen: v7x
topology: tpu7x:2x2x1
jax: 0.10.0
libtpu: 0.0.40
codegen_flags: <defaults>
</compile_context>

<pallas_src>
import functools

import jax
import jax.numpy as jnp
from jax.experimental import pallas as pl
from jax.experimental.pallas import tpu as pltpu

LANE = 128


def _round_up(x, m):
    return ((x + m - 1) // m) * m


# ---------------------------------------------------------------------------
# Fused kernel: embedding lookups (one-hot matmul) + 4-layer MLP, all padded
# to 128-wide MXU tiles. Biases are (1, pad) f32 and broadcast once.
# ---------------------------------------------------------------------------
def fused_mlp_kernel(ids_ref, cont_ref,
                     maj_ref, hse_ref,
                     w1e_ref, w1h_ref, w1c_ref, b1_ref,
                     w3_ref, b3_ref,
                     w4_ref, b4_ref,
                     w5_ref, b5_ref,
                     o_ref, *, matmul_dtype):
    md = matmul_dtype
    tb = ids_ref.shape[0]

    def mm(a, b_ref):
        # MXU matmul: (possibly bf16) operands, f32 accumulation.
        return jnp.dot(a.astype(md), b_ref[...],
                       preferred_element_type=jnp.float32)

    ids = ids_ref[...]                       # (tb, 2) int32
    cat = ids[:, 0:1]                        # major-embedding ids
    hs = ids[:, 1:2]                         # hs-embedding ids

    # Embedding lookup as one-hot @ table (exact select, runs on the MXU).
    lane_m = jax.lax.broadcasted_iota(jnp.int32, (tb, maj_ref.shape[0]), 1)
    lane_h = jax.lax.broadcasted_iota(jnp.int32, (tb, hse_ref.shape[0]), 1)
    onehot_cat = (lane_m == cat).astype(md)
    onehot_hs = (lane_h == hs).astype(md)
    emb = mm(onehot_cat, maj_ref)            # (tb, EMB_PAD)  f32
    hs_emb = mm(onehot_hs, hse_ref)          # (tb, HS_PAD)   f32

    # fc1: cat([emb, hs_emb, cont]) @ W1 == emb@W1e + hs_emb@W1h + cont@W1c
    h1 = (mm(emb, w1e_ref) + mm(hs_emb, w1h_ref)
          + jnp.dot(cont_ref[...], w1c_ref[...],
                    preferred_element_type=jnp.float32)
          + b1_ref[...])
    h1 = jnp.maximum(h1, 0.0)                                # F.relu   (f32 VPU)

    h2 = jnp.tanh(mm(h1, w3_ref) + b3_ref[...])              # torch.tanh (EUP)
    h3 = jax.nn.sigmoid(mm(h2, w4_ref) + b4_ref[...])        # F.sigmoid  (EUP)
    out = mm(h3, w5_ref) + b5_ref[...]                       # fc5
    o_ref[...] = out.astype(o_ref.dtype)


# ---------------------------------------------------------------------------
# One-time parameter preparation: pad every dim to a multiple of 128, split
# fc1's weight by input block, cast matmul operands to matmul_dtype.
# ---------------------------------------------------------------------------
def prepare_kernel_params(params, *, matmul_dtype=jnp.bfloat16):
    md = matmul_dtype

    def pad2(a, rows, cols, dtype):
        out = jnp.zeros((rows, cols), dtype)
        return out.at[:a.shape[0], :a.shape[1]].set(a.astype(dtype))

    maj = params["major_embedding"]
    hse = params["hs_embedding"]
    emb_dim, hs_dim = maj.shape[1], hse.shape[1]

    w1, b1 = params["w1"], params["b1"]
    w3, b3 = params["w3"], params["b3"]
    w4, b4 = params["w4"], params["b4"]
    w5, b5 = params["w5"], params["b5"]

    d_in, h1_dim = w1.shape
    cont_dim = d_in - emb_dim - hs_dim

    vocab_m_p = _round_up(maj.shape[0], LANE)
    vocab_h_p = _round_up(hse.shape[0], LANE)
    emb_p = _round_up(emb_dim, LANE)
    hs_p = _round_up(hs_dim, LANE)
    cont_p = _round_up(cont_dim, LANE)
    h1_p = _round_up(h1_dim, LANE)
    h2_p = _round_up(w3.shape[1], LANE)
    h3_p = _round_up(w4.shape[1], LANE)
    out_p = _round_up(w5.shape[1], LANE)

    w1e = w1[:emb_dim]                       # rows fed by major embedding
    w1h = w1[emb_dim:emb_dim + hs_dim]       # rows fed by hs embedding
    w1c = w1[emb_dim + hs_dim:]              # rows fed by continuous features

    return {
        "matmul_dtype": md,
        "n_classes": int(w5.shape[1]),
        "maj": pad2(maj, vocab_m_p, emb_p, md),
        "hse": pad2(hse, vocab_h_p, hs_p, md),
        "w1e": pad2(w1e, emb_p, h1_p, md),
        "w1h": pad2(w1h, hs_p, h1_p, md),
        "w1c": pad2(w1c, cont_p, h1_p, md),
        "b1": pad2(b1, 1, h1_p, jnp.float32),
        "w3": pad2(w3, h1_p, h2_p, md),
        "b3": pad2(b3, 1, h2_p, jnp.float32),
        "w4": pad2(w4, h2_p, h3_p, md),
        "b4": pad2(b4, 1, h3_p, jnp.float32),
        "w5": pad2(w5, h3_p, out_p, md),
        "b5": pad2(b5, 1, out_p, jnp.float32),
    }


# ---------------------------------------------------------------------------
# pallas_call wrapper: grid over the batch, weights as full-array VMEM blocks.
# ---------------------------------------------------------------------------
def _run_fused(ids_p, cont_p, kp, *, tile_b, out_pad_dim):
    B_pad = ids_p.shape[0]
    grid = (B_pad // tile_b,)

    weights = (kp["maj"], kp["hse"],
               kp["w1e"], kp["w1h"], kp["w1c"], kp["b1"],
               kp["w3"], kp["b3"], kp["w4"], kp["b4"], kp["w5"], kp["b5"])

    def full_spec(a):
        return pl.BlockSpec(a.shape, lambda i: (0, 0))

    in_specs = ([pl.BlockSpec((tile_b, ids_p.shape[1]), lambda i: (i, 0)),
                 pl.BlockSpec((tile_b, cont_p.shape[1]), lambda i: (i, 0))]
                + [full_spec(w) for w in weights])

    # Advisory cost estimate for XLA's scheduler.
    mm_bytes = sum(w.size * w.dtype.itemsize for w in weights)
    mm_flops = 2 * B_pad * sum(
        kp[k].shape[0] * kp[k].shape[1]
        for k in ("maj", "hse", "w1e", "w1h", "w1c", "w3", "w4", "w5"))
    cost = pl.CostEstimate(
        flops=mm_flops,
        transcendentals=2 * B_pad * LANE,       # tanh + sigmoid lanes
        bytes_accessed=(ids_p.size * ids_p.dtype.itemsize
                        + cont_p.size * cont_p.dtype.itemsize
                        + mm_bytes + B_pad * out_pad_dim * 4))

    kernel = functools.partial(fused_mlp_kernel,
                               matmul_dtype=kp["matmul_dtype"])

    # Per-tile VMEM: ~10 slabs of (tile_b x 128) f32 + ~1 MiB of weights —
    # comfortably inside the default scoped VMEM on v5e/v6e/v7x.
    return pl.pallas_call(
        kernel,
        out_shape=jax.ShapeDtypeStruct((B_pad, out_pad_dim), jnp.float32),
        grid=grid,
        in_specs=in_specs,
        out_specs=pl.BlockSpec((tile_b, out_pad_dim), lambda i: (i, 0)),
        compiler_params=pltpu.CompilerParams(
            # Independent batch tiles: pipeline + shard across v7x's 2 TCs.
            dimension_semantics=("parallel",)),
        cost_estimate=cost,
    )(ids_p, cont_p, *weights)


# ---------------------------------------------------------------------------
# Full forward pass matching NeuralNetwork.forward (how_many_layers == 4)
# ---------------------------------------------------------------------------
def neural_network_forward(X, kparams, *, tile_b=None):
    B, _ = X.shape
    md = kparams["matmul_dtype"]
    n_classes = kparams["n_classes"]
    cont_pad_dim = kparams["w1c"].shape[0]
    out_pad_dim = kparams["w5"].shape[1]

    # Categorical ids (cols 0 & 4); continuous cols via two contiguous slices
    # (no cross-lane gather).
    ids = jnp.stack([X[:, 0].astype(jnp.int32), X[:, 4].astype(jnp.int32)],
                    axis=1)                                        # (B, 2)
    cont = jnp.concatenate([X[:, 1:4], X[:, 5:]], axis=1).astype(jnp.float32)

    if tile_b is None:
        tile_b = min(512, _round_up(B, 8))   # 8-aligned, VMEM-friendly tiles
    B_pad = _round_up(B, tile_b)

    ids_p = jnp.zeros((B_pad, 2), jnp.int32).at[:B].set(ids)
    cont_p = jnp.zeros((B_pad, cont_pad_dim), md).at[
        :B, :cont.shape[1]].set(cont.astype(md))

    out = _run_fused(ids_p, cont_p, kparams, tile_b=tile_b,
                     out_pad_dim=out_pad_dim)
    return out[:B, :n_classes]


# ---------------------------------------------------------------------------
# Deterministic parameter init (logical shapes follow the module __init__;
# PyTorch Linear W is (out, in) — stored here pre-transposed to (in, out)).
# ---------------------------------------------------------------------------
def init_params(key, *, features, embedding_dim, hs_embedding_dim,
                major_vocab, hs_vocab, h_size, h_next_size,
                h_next_next_size, n_classes):
    keys = jax.random.split(key, 12)
    d_in = features - 2 + embedding_dim + hs_embedding_dim

    def lin(kw, kb, fan_in, fan_out):
        bound = 1.0 / (fan_in ** 0.5)
        w = jax.random.uniform(kw, (fan_in, fan_out), jnp.float32, -bound, bound)
        b = jax.random.uniform(kb, (1, fan_out), jnp.float32, -bound, bound)
        return w, b

    w1, b1 = lin(keys[0], keys[1], d_in, h_size)
    w3, b3 = lin(keys[2], keys[3], h_size, h_next_size)
    w4, b4 = lin(keys[4], keys[5], h_next_size, h_next_next_size)
    w5, b5 = lin(keys[6], keys[7], h_next_next_size, n_classes)

    return {
        "major_embedding": jax.random.normal(
            keys[8], (major_vocab, embedding_dim), jnp.float32),
        "hs_embedding": jax.random.normal(
            keys[9], (hs_vocab, hs_embedding_dim), jnp.float32),
        "w1": w1, "b1": b1, "w3": w3, "b3": b3,
        "w4": w4, "b4": b4, "w5": w5, "b5": b5,
    }


if __name__ == "__main__":
    # Small shapes consistent with the module's forward.
    B = 8                 # batch
    features = 8          # total input columns (cols 0 & 4 are categorical ids)
    embedding_dim = 32
    hs_embedding_dim = 32
    major_vocab = 10      # input_embedding_dimension (module global)
    hs_vocab = 6          # input_hs_embedding_dimension (module global)
    h_size = 64
    h_next_size = 32
    h_next_next_size = 16
    n_classes = 2

    key = jax.random.PRNGKey(0)
    k_params, k_cont, k_cat, k_hs = jax.random.split(key, 4)

    params = init_params(
        k_params,
        features=features, embedding_dim=embedding_dim,
        hs_embedding_dim=hs_embedding_dim,
        major_vocab=major_vocab, hs_vocab=hs_vocab,
        h_size=h_size, h_next_size=h_next_size,
        h_next_next_size=h_next_next_size, n_classes=n_classes,
    )

    # Build X: float matrix, integer-valued ids in columns 0 and 4.
    X = jax.random.normal(k_cont, (B, features), jnp.float32)
    cat_ids = jax.random.randint(k_cat, (B,), 0, major_vocab).astype(jnp.float32)
    hs_ids = jax.random.randint(k_hs, (B,), 0, hs_vocab).astype(jnp.float32)
    X = X.at[:, 0].set(cat_ids).at[:, 4].set(hs_ids)

    # Pure-JAX reference (mirrors NeuralNetwork.forward, 4-layer branch).
    def ref_forward(X, p):
        cat = X[:, 0].astype(jnp.int32)
        hs = X[:, 4].astype(jnp.int32)
        idx = jnp.asarray([i for i in range(X.shape[1]) if i not in (0, 4)])
        cont = X[:, idx].astype(jnp.float32)
        xcat = jnp.concatenate([p["major_embedding"][cat],
                                p["hs_embedding"][hs], cont], axis=1)
        h = jnp.maximum(xcat @ p["w1"] + p["b1"], 0.0)
        h = jnp.tanh(h @ p["w3"] + p["b3"])
        h = jax.nn.sigmoid(h @ p["w4"] + p["b4"])
        return h @ p["w5"] + p["b5"]

    ref = ref_forward(X, params)

    # f32 matmul operands: tight parity with the reference.
    kp_f32 = prepare_kernel_params(params, matmul_dtype=jnp.float32)
    out_f32 = jax.block_until_ready(neural_network_forward(X, kp_f32))
    assert out_f32.shape == (B, n_classes)
    assert jnp.allclose(out_f32, ref, atol=1e-4, rtol=1e-4)

    # bf16 matmul operands (v6e/v7x fast path; f32 accumulation & activations).
    kp_bf16 = prepare_kernel_params(params, matmul_dtype=jnp.bfloat16)
    out_bf16 = jax.block_until_ready(neural_network_forward(X, kp_bf16))
    assert out_bf16.shape == (B, n_classes)
    assert jnp.allclose(out_bf16, ref, atol=5e-2, rtol=5e-2)

    print("KERNEL_OK")
</pallas_src>

<mosaic_0001>
module attributes {stable_mosaic.version = 11 : i64} {
  func.func @fused_mlp_kernel(%arg0: i32, %arg1: memref<8x2xi32, #tpu.memory_space<vmem>>, %arg2: memref<8x128xf32, #tpu.memory_space<vmem>>, %arg3: memref<128x128xf32, #tpu.memory_space<vmem>>, %arg4: memref<128x128xf32, #tpu.memory_space<vmem>>, %arg5: memref<128x128xf32, #tpu.memory_space<vmem>>, %arg6: memref<128x128xf32, #tpu.memory_space<vmem>>, %arg7: memref<128x128xf32, #tpu.memory_space<vmem>>, %arg8: memref<1x128xf32, #tpu.memory_space<vmem>>, %arg9: memref<128x128xf32, #tpu.memory_space<vmem>>, %arg10: memref<1x128xf32, #tpu.memory_space<vmem>>, %arg11: memref<128x128xf32, #tpu.memory_space<vmem>>, %arg12: memref<1x128xf32, #tpu.memory_space<vmem>>, %arg13: memref<128x128xf32, #tpu.memory_space<vmem>>, %arg14: memref<1x128xf32, #tpu.memory_space<vmem>>, %arg15: memref<8x128xf32, #tpu.memory_space<vmem>>) attributes {dimension_semantics = [#tpu.dimension_semantics<parallel>], iteration_bounds = array<i64: 1>, scalar_prefetch = 0 : i64, scratch_operands = 0 : i64, tpu.core_type = #tpu.core_type<tc>, window_params = [{transform_indices = @transform_0, window_bounds = array<i64: 8, 2>}, {transform_indices = @transform_1, window_bounds = array<i64: 8, 128>}, {pipeline_mode = #tpu.pipeline_mode<synchronous>, transform_indices = @transform_2, window_bounds = array<i64: 128, 128>}, {pipeline_mode = #tpu.pipeline_mode<synchronous>, transform_indices = @transform_3, window_bounds = array<i64: 128, 128>}, {pipeline_mode = #tpu.pipeline_mode<synchronous>, transform_indices = @transform_4, window_bounds = array<i64: 128, 128>}, {pipeline_mode = #tpu.pipeline_mode<synchronous>, transform_indices = @transform_5, window_bounds = array<i64: 128, 128>}, {pipeline_mode = #tpu.pipeline_mode<synchronous>, transform_indices = @transform_6, window_bounds = array<i64: 128, 128>}, {pipeline_mode = #tpu.pipeline_mode<synchronous>, transform_indices = @transform_7, window_bounds = array<i64: 1, 128>}, {pipeline_mode = #tpu.pipeline_mode<synchronous>, transform_indices = @transform_8, window_bounds = array<i64: 128, 128>}, {pipeline_mode = #tpu.pipeline_mode<synchronous>, transform_indices = @transform_9, window_bounds = array<i64: 1, 128>}, {pipeline_mode = #tpu.pipeline_mode<synchronous>, transform_indices = @transform_10, window_bounds = array<i64: 128, 128>}, {pipeline_mode = #tpu.pipeline_mode<synchronous>, transform_indices = @transform_11, window_bounds = array<i64: 1, 128>}, {pipeline_mode = #tpu.pipeline_mode<synchronous>, transform_indices = @transform_12, window_bounds = array<i64: 128, 128>}, {pipeline_mode = #tpu.pipeline_mode<synchronous>, transform_indices = @transform_13, window_bounds = array<i64: 1, 128>}, {transform_indices = @transform_14, window_bounds = array<i64: 8, 128>}]} {
    %c0 = arith.constant 0 : index
    %c0_0 = arith.constant 0 : index
    %0 = vector.load %arg1[%c0, %c0_0] : memref<8x2xi32, #tpu.memory_space<vmem>>, vector<8x2xi32>
    %1 = vector.extract_strided_slice %0 {offsets = [0, 0], sizes = [8, 1], strides = [1, 1]} : vector<8x2xi32> to vector<8x1xi32>
    %2 = vector.extract_strided_slice %0 {offsets = [0, 1], sizes = [8, 1], strides = [1, 1]} : vector<8x2xi32> to vector<8x1xi32>
    %3 = tpu.iota {dimensions = array<i32: 1>} : vector<8x128xi32>
    %4 = tpu.iota {dimensions = array<i32: 1>} : vector<8x128xi32>
    %5 = vector.broadcast %1 : vector<8x1xi32> to vector<8x128xi32>
    %6 = arith.cmpi eq, %3, %5 : vector<8x128xi32>
    %7 = arith.extui %6 : vector<8x128xi1> to vector<8x128xi32>
    %8 = arith.sitofp %7 : vector<8x128xi32> to vector<8x128xf32>
    %9 = vector.broadcast %2 : vector<8x1xi32> to vector<8x128xi32>
    %10 = arith.cmpi eq, %4, %9 : vector<8x128xi32>
    %11 = arith.extui %10 : vector<8x128xi1> to vector<8x128xi32>
    %12 = arith.sitofp %11 : vector<8x128xi32> to vector<8x128xf32>
    %c0_1 = arith.constant 0 : index
    %c0_2 = arith.constant 0 : index
    %13 = vector.load %arg3[%c0_1, %c0_2] : memref<128x128xf32, #tpu.memory_space<vmem>>, vector<128x128xf32>
    %cst = arith.constant dense<0.000000e+00> : vector<8x128xf32>
    %14 = tpu.matmul %8, %13, %cst {dimension_numbers = #tpu.dot_dimension_numbers<[1], [0], [0], [1], [0, 0, 1, 1], [], []>} : vector<8x128xf32>, vector<128x128xf32>, vector<8x128xf32> -> vector<8x128xf32>
    %c0_3 = arith.constant 0 : index
    %c0_4 = arith.constant 0 : index
    %15 = vector.load %arg4[%c0_3, %c0_4] : memref<128x128xf32, #tpu.memory_space<vmem>>, vector<128x128xf32>
    %cst_5 = arith.constant dense<0.000000e+00> : vector<8x128xf32>
    %16 = tpu.matmul %12, %15, %cst_5 {dimension_numbers = #tpu.dot_dimension_numbers<[1], [0], [0], [1], [0, 0, 1, 1], [], []>} : vector<8x128xf32>, vector<128x128xf32>, vector<8x128xf32> -> vector<8x128xf32>
    %c0_6 = arith.constant 0 : index
    %c0_7 = arith.constant 0 : index
    %17 = vector.load %arg5[%c0_6, %c0_7] : memref<128x128xf32, #tpu.memory_space<vmem>>, vector<128x128xf32>
    %cst_8 = arith.constant dense<0.000000e+00> : vector<8x128xf32>
    %18 = tpu.matmul %14, %17, %cst_8 {dimension_numbers = #tpu.dot_dimension_numbers<[1], [0], [0], [1], [0, 0, 1, 1], [], []>} : vector<8x128xf32>, vector<128x128xf32>, vector<8x128xf32> -> vector<8x128xf32>
    %c0_9 = arith.constant 0 : index
    %c0_10 = arith.constant 0 : index
    %19 = vector.load %arg6[%c0_9, %c0_10] : memref<128x128xf32, #tpu.memory_space<vmem>>, vector<128x128xf32>
    %cst_11 = arith.constant dense<0.000000e+00> : vector<8x128xf32>
    %20 = tpu.matmul %16, %19, %cst_11 {dimension_numbers = #tpu.dot_dimension_numbers<[1], [0], [0], [1], [0, 0, 1, 1], [], []>} : vector<8x128xf32>, vector<128x128xf32>, vector<8x128xf32> -> vector<8x128xf32>
    %21 = arith.addf %18, %20 : vector<8x128xf32>
    %c0_12 = arith.constant 0 : index
    %c0_13 = arith.constant 0 : index
    %22 = vector.load %arg2[%c0_12, %c0_13] : memref<8x128xf32, #tpu.memory_space<vmem>>, vector<8x128xf32>
    %c0_14 = arith.constant 0 : index
    %c0_15 = arith.constant 0 : index
    %23 = vector.load %arg7[%c0_14, %c0_15] : memref<128x128xf32, #tpu.memory_space<vmem>>, vector<128x128xf32>
    %cst_16 = arith.constant dense<0.000000e+00> : vector<8x128xf32>
    %24 = tpu.matmul %22, %23, %cst_16 {dimension_numbers = #tpu.dot_dimension_numbers<[1], [0], [0], [1], [0, 0, 1, 1], [], []>} : vector<8x128xf32>, vector<128x128xf32>, vector<8x128xf32> -> vector<8x128xf32>
    %25 = arith.addf %21, %24 : vector<8x128xf32>
    %c0_17 = arith.constant 0 : index
    %c0_18 = arith.constant 0 : index
    %26 = vector.load %arg8[%c0_17, %c0_18] : memref<1x128xf32, #tpu.memory_space<vmem>>, vector<1x128xf32>
    %27 = vector.broadcast %26 : vector<1x128xf32> to vector<8x128xf32>
    %28 = arith.addf %25, %27 : vector<8x128xf32>
    %cst_19 = arith.constant 0.000000e+00 : f32
    %29 = vector.broadcast %cst_19 : f32 to vector<8x128xf32>
    %30 = arith.maximumf %28, %29 : vector<8x128xf32>
    %c0_20 = arith.constant 0 : index
    %c0_21 = arith.constant 0 : index
    %31 = vector.load %arg9[%c0_20, %c0_21] : memref<128x128xf32, #tpu.memory_space<vmem>>, vector<128x128xf32>
    %cst_22 = arith.constant dense<0.000000e+00> : vector<8x128xf32>
    %32 = tpu.matmul %30, %31, %cst_22 {dimension_numbers = #tpu.dot_dimension_numbers<[1], [0], [0], [1], [0, 0, 1, 1], [], []>} : vector<8x128xf32>, vector<128x128xf32>, vector<8x128xf32> -> vector<8x128xf32>
    %c0_23 = arith.constant 0 : index
    %c0_24 = arith.constant 0 : index
    %33 = vector.load %arg10[%c0_23, %c0_24] : memref<1x128xf32, #tpu.memory_space<vmem>>, vector<1x128xf32>
    %34 = vector.broadcast %33 : vector<1x128xf32> to vector<8x128xf32>
    %35 = arith.addf %32, %34 : vector<8x128xf32>
    %36 = math.tanh %35 : vector<8x128xf32>
    %c0_25 = arith.constant 0 : index
    %c0_26 = arith.constant 0 : index
    %37 = vector.load %arg11[%c0_25, %c0_26] : memref<128x128xf32, #tpu.memory_space<vmem>>, vector<128x128xf32>
    %cst_27 = arith.constant dense<0.000000e+00> : vector<8x128xf32>
    %38 = tpu.matmul %36, %37, %cst_27 {dimension_numbers = #tpu.dot_dimension_numbers<[1], [0], [0], [1], [0, 0, 1, 1], [], []>} : vector<8x128xf32>, vector<128x128xf32>, vector<8x128xf32> -> vector<8x128xf32>
    %c0_28 = arith.constant 0 : index
    %c0_29 = arith.constant 0 : index
    %39 = vector.load %arg12[%c0_28, %c0_29] : memref<1x128xf32, #tpu.memory_space<vmem>>, vector<1x128xf32>
    %40 = vector.broadcast %39 : vector<1x128xf32> to vector<8x128xf32>
    %41 = arith.addf %38, %40 : vector<8x128xf32>
    %42 = arith.negf %41 : vector<8x128xf32>
    %43 = math.exp %42 : vector<8x128xf32>
    %cst_30 = arith.constant 1.000000e+00 : f32
    %44 = vector.broadcast %cst_30 : f32 to vector<8x128xf32>
    %45 = arith.addf %44, %43 : vector<8x128xf32>
    %46 = arith.divf %44, %45 : vector<8x128xf32>
    %c0_31 = arith.constant 0 : index
    %c0_32 = arith.constant 0 : index
    %47 = vector.load %arg13[%c0_31, %c0_32] : memref<128x128xf32, #tpu.memory_space<vmem>>, vector<128x128xf32>
    %cst_33 = arith.constant dense<0.000000e+00> : vector<8x128xf32>
    %48 = tpu.matmul %46, %47, %cst_33 {dimension_numbers = #tpu.dot_dimension_numbers<[1], [0], [0], [1], [0, 0, 1, 1], [], []>} : vector<8x128xf32>, vector<128x128xf32>, vector<8x128xf32> -> vector<8x128xf32>
    %c0_34 = arith.constant 0 : index
    %c0_35 = arith.constant 0 : index
    %49 = vector.load %arg14[%c0_34, %c0_35] : memref<1x128xf32, #tpu.memory_space<vmem>>, vector<1x128xf32>
    %50 = vector.broadcast %49 : vector<1x128xf32> to vector<8x128xf32>
    %51 = arith.addf %48, %50 : vector<8x128xf32>
    %c0_36 = arith.constant 0 : index
    %c0_37 = arith.constant 0 : index
    %52 = vector.load %arg15[%c0_36, %c0_37] : memref<8x128xf32, #tpu.memory_space<vmem>>, vector<8x128xf32>
    tpu.vector_store %arg15[%c0_36, %c0_37], %51 {strides = array<i32>} : memref<8x128xf32, #tpu.memory_space<vmem>>, vector<8x128xf32>,
    return
  }
  func.func @transform_0(%arg0: i32) -> (i32, i32) {
    %c0_i32 = arith.constant 0 : i32
    %c0_i32_0 = arith.constant 0 : i32
    return %arg0, %c0_i32 : i32, i32
  }
  func.func @transform_1(%arg0: i32) -> (i32, i32) {
    %c0_i32 = arith.constant 0 : i32
    %c0_i32_0 = arith.constant 0 : i32
    return %arg0, %c0_i32 : i32, i32
  }
  func.func @transform_2(%arg0: i32) -> (i32, i32) {
    %c0_i32 = arith.constant 0 : i32
    %c0_i32_0 = arith.constant 0 : i32
    %c0_i32_1 = arith.constant 0 : i32
    return %c0_i32, %c0_i32_0 : i32, i32
  }
  func.func @transform_3(%arg0: i32) -> (i32, i32) {
    %c0_i32 = arith.constant 0 : i32
    %c0_i32_0 = arith.constant 0 : i32
    %c0_i32_1 = arith.constant 0 : i32
    return %c0_i32, %c0_i32_0 : i32, i32
  }
  func.func @transform_4(%arg0: i32) -> (i32, i32) {
    %c0_i32 = arith.constant 0 : i32
    %c0_i32_0 = arith.constant 0 : i32
    %c0_i32_1 = arith.constant 0 : i32
    return %c0_i32, %c0_i32_0 : i32, i32
  }
  func.func @transform_5(%arg0: i32) -> (i32, i32) {
    %c0_i32 = arith.constant 0 : i32
    %c0_i32_0 = arith.constant 0 : i32
    %c0_i32_1 = arith.constant 0 : i32
    return %c0_i32, %c0_i32_0 : i32, i32
  }
  func.func @transform_6(%arg0: i32) -> (i32, i32) {
    %c0_i32 = arith.constant 0 : i32
    %c0_i32_0 = arith.constant 0 : i32
    %c0_i32_1 = arith.constant 0 : i32
    return %c0_i32, %c0_i32_0 : i32, i32
  }
  func.func @transform_7(%arg0: i32) -> (i32, i32) {
    %c0_i32 = arith.constant 0 : i32
    %c0_i32_0 = arith.constant 0 : i32
    %c0_i32_1 = arith.constant 0 : i32
    return %c0_i32, %c0_i32_0 : i32, i32
  }
  func.func @transform_8(%arg0: i32) -> (i32, i32) {
    %c0_i32 = arith.constant 0 : i32
    %c0_i32_0 = arith.constant 0 : i32
    %c0_i32_1 = arith.constant 0 : i32
    return %c0_i32, %c0_i32_0 : i32, i32
  }
  func.func @transform_9(%arg0: i32) -> (i32, i32) {
    %c0_i32 = arith.constant 0 : i32
    %c0_i32_0 = arith.constant 0 : i32
    %c0_i32_1 = arith.constant 0 : i32
    return %c0_i32, %c0_i32_0 : i32, i32
  }
  func.func @transform_10(%arg0: i32) -> (i32, i32) {
    %c0_i32 = arith.constant 0 : i32
    %c0_i32_0 = arith.constant 0 : i32
    %c0_i32_1 = arith.constant 0 : i32
    return %c0_i32, %c0_i32_0 : i32, i32
  }
  func.func @transform_11(%arg0: i32) -> (i32, i32) {
    %c0_i32 = arith.constant 0 : i32
    %c0_i32_0 = arith.constant 0 : i32
    %c0_i32_1 = arith.constant 0 : i32
    return %c0_i32, %c0_i32_0 : i32, i32
  }
  func.func @transform_12(%arg0: i32) -> (i32, i32) {
    %c0_i32 = arith.constant 0 : i32
    %c0_i32_0 = arith.constant 0 : i32
    %c0_i32_1 = arith.constant 0 : i32
    return %c0_i32, %c0_i32_0 : i32, i32
  }
  func.func @transform_13(%arg0: i32) -> (i32, i32) {
    %c0_i32 = arith.constant 0 : i32
    %c0_i32_0 = arith.constant 0 : i32
    %c0_i32_1 = arith.constant 0 : i32
    return %c0_i32, %c0_i32_0 : i32, i32
  }
  func.func @transform_14(%arg0: i32) -> (i32, i32) {
    %c0_i32 = arith.constant 0 : i32
    %c0_i32_0 = arith.constant 0 : i32
    return %arg0, %c0_i32 : i32, i32
  }
}

</mosaic_0001>

<llo_original>
// kernel: tpu_custom_call.1
$region0: #{tpu_custom_call.1}
  #allocation0 [shape = 'u32[]', space=smem, size = 0x4, offset = 0x4, fixed_abs, tag = 'smem constant byte address 0x4 - core index']
  #allocation1 [shape = 'u32[144,128]{1,0:T(1,128)}', space=vmem, size = 0x12000, scoped, tag = 'internal scratch']
  %s0 = inlined_call_operand.vmem [shape: s32[8,2], index: 0, kind: input, shape index: {}]
  %s1 = inlined_call_operand.vmem [shape: f32[8,128], index: 1, kind: input, shape index: {}]
  %s2 = inlined_call_operand.hbm [shape: f32[128,128], index: 2, kind: input, shape index: {}]
  %s3 = inlined_call_operand.hbm [shape: f32[128,128], index: 3, kind: input, shape index: {}]
  %s4 = inlined_call_operand.hbm [shape: f32[128,128], index: 4, kind: input, shape index: {}]
  %s5 = inlined_call_operand.hbm [shape: f32[128,128], index: 5, kind: input, shape index: {}]
  %s6 = inlined_call_operand.hbm [shape: f32[128,128], index: 6, kind: input, shape index: {}]
  %s7 = inlined_call_operand.vmem [shape: f32[1,128], index: 7, kind: input, shape index: {}]
  %s8 = inlined_call_operand.hbm [shape: f32[128,128], index: 8, kind: input, shape index: {}]
  %s9 = inlined_call_operand.vmem [shape: f32[1,128], index: 9, kind: input, shape index: {}]
  %s10 = inlined_call_operand.hbm [shape: f32[128,128], index: 10, kind: input, shape index: {}]
  %s11 = inlined_call_operand.vmem [shape: f32[1,128], index: 11, kind: input, shape index: {}]
  %s12 = inlined_call_operand.hbm [shape: f32[128,128], index: 12, kind: input, shape index: {}]
  %s13 = inlined_call_operand.vmem [shape: f32[1,128], index: 13, kind: input, shape index: {}]
  %s14 = inlined_call_operand.hbm [shape: f32[8,128], index: 14, kind: output, shape index: {}]
  %s15 = sld [smem:[#allocation0]]
  $region98: #{tpu_custom_call.1} parent=0
    _
  %s17 = ssub.s32 1, %s15
  %s18 = scalar_select 0, %s17, %s15
  $region1: #{tpu_custom_call.1} parent=0
    #allocation2 [shape = 'u8[65536]{0}', space=vmem, size = 0x10000, scoped, tag = 'input window, operand 2, single buffered']
    #allocation3 [shape = 's32[1]{0}', space=sflag, size = 0x4, scoped, tag = 'scoped memory for tpu_custom_call.1']
    #allocation4 [shape = 's32[1]{0}', space=sflag, size = 0x4, scoped, tag = 'scoped memory for tpu_custom_call.1']
    #allocation5 [shape = 'u8[65536]{0}', space=vmem, size = 0x10000, scoped, tag = 'input window, operand 3, single buffered']
    #allocation6 [shape = 's32[1]{0}', space=sflag, size = 0x4, scoped, tag = 'scoped memory for tpu_custom_call.1']
    #allocation7 [shape = 'u8[65536]{0}', space=vmem, size = 0x10000, scoped, tag = 'input window, operand 4, single buffered']
    #allocation8 [shape = 'u8[65536]{0}', space=vmem, size = 0x10000, scoped, tag = 'input window, operand 5, single buffered']
    #allocation9 [shape = 's32[1]{0}', space=sflag, size = 0x4, scoped, tag = 'scoped memory for tpu_custom_call.1']
    #allocation10 [shape = 'u8[65536]{0}', space=vmem, size = 0x10000, scoped, tag = 'input window, operand 6, single buffered']
    #allocation11 [shape = 'u8[65536]{0}', space=vmem, size = 0x10000, scoped, tag = 'input window, operand 8, single buffered']
    #allocation12 [shape = 's32[1]{0}', space=sflag, size = 0x4, scoped, tag = 'scoped memory for tpu_custom_call.1']
    #allocation13 [shape = 'u8[65536]{0}', space=vmem, size = 0x10000, scoped, tag = 'input window, operand 10, single buffered']
    #allocation14 [shape = 'u8[65536]{0}', space=vmem, size = 0x10000, scoped, tag = 'input window, operand 12, single buffered']
    #allocation15 [shape = 's32[1]{0}', space=sflag, size = 0x4, scoped, tag = 'scoped memory for tpu_custom_call.1']
    #allocation16 [shape = 'u8[4096]{0}', space=vmem, size = 0x1000, scoped, tag = 'output window, operand 0, single buffered']
    %19 = vsyncpa [#allocation3], 0
    %20 = vsyncpa [#allocation6], 0
    %21 = vsyncpa [#allocation9], 0
    %22 = vsyncpa [#allocation12], 0
    %23 = vsyncpa [#allocation15], 0
    %24 = vsyncpa [#allocation4], 0
    // Predicated region
    $region2: #{tpu_custom_call.1} parent=1 // pred_check
      _
    $region3: #{tpu_custom_call.1} parent=1 // pred_check_branch
      %26 = sbr.rel (0) target = $region5
    $region4: #{tpu_custom_call.1} parent=1 // pred_region
      _
    $region5: #{tpu_custom_call.1} parent=1 // pred_fallthru
      _
    // Predicated region
    $region6: #{tpu_custom_call.1} parent=1 // pred_check
      _
    $region7: #{tpu_custom_call.1} parent=1 // pred_check_branch
      %28 = sbr.rel (0) target = $region9
    $region8: #{tpu_custom_call.1} parent=1 // pred_region
      _
    $region9: #{tpu_custom_call.1} parent=1 // pred_fallthru
      _
    // Predicated region
    $region10: #{tpu_custom_call.1} parent=1 // pred_check
      _
    $region11: #{tpu_custom_call.1} parent=1 // pred_check_branch
      %30 = sbr.rel (0) target = $region13
    $region12: #{tpu_custom_call.1} parent=1 // pred_region
      %s32 = ssub.s32 2048, 2048
      %33 = vsyncadd [#allocation3], %s32
      %s34 = sshll.u32 [#allocation2], 4
      %s35 = int_to_ptr.vmem [resolvable:$true] %s34
      %40 = dma.hbm_to_vmem [thread:$0]  %s2, 2048, %s35, [#allocation3], 128, 128, 8
    $region13: #{tpu_custom_call.1} parent=1 // pred_fallthru
      _
    // Predicated region
    $region14: #{tpu_custom_call.1} parent=1 // pred_check
      _
    $region15: #{tpu_custom_call.1} parent=1 // pred_check_branch
      %42 = sbr.rel (0) target = $region17
    $region16: #{tpu_custom_call.1} parent=1 // pred_region
      %s44 = ssub.s32 2048, 2048
      %45 = vsyncadd [#allocation6], %s44
      %s46 = sshll.u32 [#allocation5], 4
      %s47 = int_to_ptr.vmem [resolvable:$true] %s46
      %52 = dma.hbm_to_vmem [thread:$0]  %s3, 2048, %s47, [#allocation6], 128, 128, 8
    $region17: #{tpu_custom_call.1} parent=1 // pred_fallthru
      _
    // Predicated region
    $region18: #{tpu_custom_call.1} parent=1 // pred_check
      _
    $region19: #{tpu_custom_call.1} parent=1 // pred_check_branch
      %54 = sbr.rel (0) target = $region21
    $region20: #{tpu_custom_call.1} parent=1 // pred_region
      %s56 = ssub.s32 2048, 2048
      %57 = vsyncadd [#allocation6], %s56
      %s58 = sshll.u32 [#allocation7], 4
      %s59 = int_to_ptr.vmem [resolvable:$true] %s58
      %64 = dma.hbm_to_vmem [thread:$0]  %s4, 2048, %s59, [#allocation6], 128, 128, 8
    $region21: #{tpu_custom_call.1} parent=1 // pred_fallthru
      _
    // Predicated region
    $region22: #{tpu_custom_call.1} parent=1 // pred_check
      _
    $region23: #{tpu_custom_call.1} parent=1 // pred_check_branch
      %66 = sbr.rel (0) target = $region25
    $region24: #{tpu_custom_call.1} parent=1 // pred_region
      %s68 = ssub.s32 2048, 2048
      %69 = vsyncadd [#allocation9], %s68
      %s70 = sshll.u32 [#allocation8], 4
      %s71 = int_to_ptr.vmem [resolvable:$true] %s70
      %76 = dma.hbm_to_vmem [thread:$0]  %s5, 2048, %s71, [#allocation9], 128, 128, 8
    $region25: #{tpu_custom_call.1} parent=1 // pred_fallthru
      _
    // Predicated region
    $region26: #{tpu_custom_call.1} parent=1 // pred_check
      _
    $region27: #{tpu_custom_call.1} parent=1 // pred_check_branch
      %78 = sbr.rel (0) target = $region29
    $region28: #{tpu_custom_call.1} parent=1 // pred_region
      %s80 = ssub.s32 2048, 2048
      %81 = vsyncadd [#allocation9], %s80
      %s82 = sshll.u32 [#allocation10], 4
      %s83 = int_to_ptr.vmem [resolvable:$true] %s82
      %88 = dma.hbm_to_vmem [thread:$0]  %s6, 2048, %s83, [#allocation9], 128, 128, 8
    $region29: #{tpu_custom_call.1} parent=1 // pred_fallthru
      _
    // Predicated region
    $region30: #{tpu_custom_call.1} parent=1 // pred_check
      _
    $region31: #{tpu_custom_call.1} parent=1 // pred_check_branch
      %90 = sbr.rel (0) target = $region33
    $region32: #{tpu_custom_call.1} parent=1 // pred_region
      _
    $region33: #{tpu_custom_call.1} parent=1 // pred_fallthru
      _
    // Predicated region
    $region34: #{tpu_custom_call.1} parent=1 // pred_check
      _
    $region35: #{tpu_custom_call.1} parent=1 // pred_check_branch
      %92 = sbr.rel (0) target = $region37
    $region36: #{tpu_custom_call.1} parent=1 // pred_region
      %s94 = ssub.s32 2048, 2048
      %95 = vsyncadd [#allocation12], %s94
      %s96 = sshll.u32 [#allocation11], 4
      %s97 = int_to_ptr.vmem [resolvable:$true] %s96
      %102 = dma.hbm_to_vmem [thread:$0]  %s8, 2048, %s97, [#allocation12], 128, 128, 8
    $region37: #{tpu_custom_call.1} parent=1 // pred_fallthru
      _
    // Predicated region
    $region38: #{tpu_custom_call.1} parent=1 // pred_check
      _
    $region39: #{tpu_custom_call.1} parent=1 // pred_check_branch
      %104 = sbr.rel (0) target = $region41
    $region40: #{tpu_custom_call.1} parent=1 // pred_region
      _
    $region41: #{tpu_custom_call.1} parent=1 // pred_fallthru
      _
    // Predicated region
    $region42: #{tpu_custom_call.1} parent=1 // pred_check
      _
    $region43: #{tpu_custom_call.1} parent=1 // pred_check_branch
      %106 = sbr.rel (0) target = $region45
    $region44: #{tpu_custom_call.1} parent=1 // pred_region
      %s108 = ssub.s32 2048, 2048
      %109 = vsyncadd [#allocation12], %s108
      %s110 = sshll.u32 [#allocation13], 4
      %s111 = int_to_ptr.vmem [resolvable:$true] %s110
      %116 = dma.hbm_to_vmem [thread:$0]  %s10, 2048, %s111, [#allocation12], 128, 128, 8
    $region45: #{tpu_custom_call.1} parent=1 // pred_fallthru
      _
    // Predicated region
    $region46: #{tpu_custom_call.1} parent=1 // pred_check
      _
    $region47: #{tpu_custom_call.1} parent=1 // pred_check_branch
      %118 = sbr.rel (0) target = $region49
    $region48: #{tpu_custom_call.1} parent=1 // pred_region
      _
    $region49: #{tpu_custom_call.1} parent=1 // pred_fallthru
      _
    // Predicated region
    $region50: #{tpu_custom_call.1} parent=1 // pred_check
      _
    $region51: #{tpu_custom_call.1} parent=1 // pred_check_branch
      %120 = sbr.rel (0) target = $region53
    $region52: #{tpu_custom_call.1} parent=1 // pred_region
      %s122 = ssub.s32 2048, 2048
      %123 = vsyncadd [#allocation15], %s122
      %s124 = sshll.u32 [#allocation14], 4
      %s125 = int_to_ptr.vmem [resolvable:$true] %s124
      %130 = dma.hbm_to_vmem [thread:$0]  %s12, 2048, %s125, [#allocation15], 128, 128, 8
    $region53: #{tpu_custom_call.1} parent=1 // pred_fallthru
      _
    // Predicated region
    $region54: #{tpu_custom_call.1} parent=1 // pred_check
      _
    $region55: #{tpu_custom_call.1} parent=1 // pred_check_branch
      %132 = sbr.rel (0) target = $region57
    $region56: #{tpu_custom_call.1} parent=1 // pred_region
      _
    $region57: #{tpu_custom_call.1} parent=1 // pred_fallthru
      _
    // Predicated region
    $region58: #{tpu_custom_call.1} parent=1 // pred_check
      _
    $region59: #{tpu_custom_call.1} parent=1 // pred_check_branch
      %134 = sbr.rel (0) target = $region61
    $region60: #{tpu_custom_call.1} parent=1 // pred_region
      %135 = dma.done [#allocation3], 2048
    $region61: #{tpu_custom_call.1} parent=1 // pred_fallthru
      _
    // Predicated region
    $region62: #{tpu_custom_call.1} parent=1 // pred_check
      _
    $region63: #{tpu_custom_call.1} parent=1 // pred_check_branch
      %137 = sbr.rel (0) target = $region65
    $region64: #{tpu_custom_call.1} parent=1 // pred_region
      %138 = dma.done [#allocation6], 2048
    $region65: #{tpu_custom_call.1} parent=1 // pred_fallthru
      _
    // Predicated region
    $region66: #{tpu_custom_call.1} parent=1 // pred_check
      _
    $region67: #{tpu_custom_call.1} parent=1 // pred_check_branch
      %140 = sbr.rel (0) target = $region69
    $region68: #{tpu_custom_call.1} parent=1 // pred_region
      %141 = dma.done [#allocation6], 2048
    $region69: #{tpu_custom_call.1} parent=1 // pred_fallthru
      _
    // Predicated region
    $region70: #{tpu_custom_call.1} parent=1 // pred_check
      _
    $region71: #{tpu_custom_call.1} parent=1 // pred_check_branch
      %143 = sbr.rel (0) target = $region73
    $region72: #{tpu_custom_call.1} parent=1 // pred_region
      %144 = dma.done [#allocation9], 2048
    $region73: #{tpu_custom_call.1} parent=1 // pred_fallthru
      _
    // Predicated region
    $region74: #{tpu_custom_call.1} parent=1 // pred_check
      _
    $region75: #{tpu_custom_call.1} parent=1 // pred_check_branch
      %146 = sbr.rel (0) target = $region77
    $region76: #{tpu_custom_call.1} parent=1 // pred_region
      %147 = dma.done [#allocation9], 2048
    $region77: #{tpu_custom_call.1} parent=1 // pred_fallthru
      _
    // Predicated region
    $region78: #{tpu_custom_call.1} parent=1 // pred_check
      _
    $region79: #{tpu_custom_call.1} parent=1 // pred_check_branch
      %149 = sbr.rel (0) target = $region81
    $region80: #{tpu_custom_call.1} parent=1 // pred_region
      %150 = dma.done [#allocation12], 2048
    $region81: #{tpu_custom_call.1} parent=1 // pred_fallthru
      _
    // Predicated region
    $region82: #{tpu_custom_call.1} parent=1 // pred_check
      _
    $region83: #{tpu_custom_call.1} parent=1 // pred_check_branch
      %152 = sbr.rel (0) target = $region85
    $region84: #{tpu_custom_call.1} parent=1 // pred_region
      %153 = dma.done [#allocation12], 2048
    $region85: #{tpu_custom_call.1} parent=1 // pred_fallthru
      _
    // Predicated region
    $region86: #{tpu_custom_call.1} parent=1 // pred_check
      _
    $region87: #{tpu_custom_call.1} parent=1 // pred_check_branch
      %155 = sbr.rel (0) target = $region89
    $region88: #{tpu_custom_call.1} parent=1 // pred_region
      %156 = dma.done [#allocation15], 2048
    $region89: #{tpu_custom_call.1} parent=1 // pred_fallthru
      _
    %v157 = vld [vmem:[%s0] sm:$0xff]
    %v158 = vlaneseq
    %v159 = vand.u32 %v158, 127
    %160 = vset.pattern.permute.xlu0 0
    %161 = vperm.xlu0 %160, %v157
    %v162 = vpop.permute.xlu0 %161
    %vm163 = vcmp.eq.s32.totalorder %v159, %v162
    %v164 = vsel %vm163, 1, 0
    %v165 = vcvt.s32.f32 %v164
    %166 = vset.pattern.permute.xlu0 1
    %167 = vperm.xlu0 %166, %v157
    %v168 = vpop.permute.xlu0 %167
    %vm169 = vcmp.eq.s32.totalorder %v159, %v168
    %v170 = vsel %vm169, 1, 0
    %v171 = vcvt.s32.f32 %v170
    %v172 = vld [vmem:[#allocation2] sm:$0xff]
    %v173 = vld [vmem:[#allocation2 + $0x8] sm:$0xff]
    %v174 = vld [vmem:[#allocation2 + $0x10] sm:$0xff]
    %v175 = vld [vmem:[#allocation2 + $0x18] sm:$0xff]
    %v176 = vld [vmem:[#allocation2 + $0x20] sm:$0xff]
    %v177 = vld [vmem:[#allocation2 + $0x28] sm:$0xff]
    %v178 = vld [vmem:[#allocation2 + $0x30] sm:$0xff]
    %v179 = vld [vmem:[#allocation2 + $0x38] sm:$0xff]
    %v180 = vld [vmem:[#allocation2 + $0x40] sm:$0xff]
    %v181 = vld [vmem:[#allocation2 + $0x48] sm:$0xff]
    %v182 = vld [vmem:[#allocation2 + $0x50] sm:$0xff]
    %v183 = vld [vmem:[#allocation2 + $0x58] sm:$0xff]
    %v184 = vld [vmem:[#allocation2 + $0x60] sm:$0xff]
    %v185 = vld [vmem:[#allocation2 + $0x68] sm:$0xff]
    %v186 = vld [vmem:[#allocation2 + $0x70] sm:$0xff]
    %v187 = vld [vmem:[#allocation2 + $0x78] sm:$0xff]
    %188 = vmatprep.subr.mxu0 0.0
    %189 = vmatpush1.msra.mxu0 %v172
    %190 = vmatprep.subr.mxu0 0.0
    %191 = vmatpush1.msra.mxu0 %v173
    %192 = vmatprep.subr.mxu0 0.0
    %193 = vmatpush1.msra.mxu0 %v174
    %194 = vmatprep.subr.mxu0 0.0
    %195 = vmatpush1.msra.mxu0 %v175
    %196 = vmatprep.subr.mxu0 0.0
    %197 = vmatpush1.msra.mxu0 %v176
    %198 = vmatprep.subr.mxu0 0.0
    %199 = vmatpush1.msra.mxu0 %v177
    %200 = vmatprep.subr.mxu0 0.0
    %201 = vmatpush1.msra.mxu0 %v178
    %202 = vmatprep.subr.mxu0 0.0
    %203 = vmatpush1.msra.mxu0 %v179
    %204 = vmatprep.subr.mxu0 0.0
    %205 = vmatpush1.msra.mxu0 %v180
    %206 = vmatprep.subr.mxu0 0.0
    %207 = vmatpush1.msra.mxu0 %v181
    %208 = vmatprep.subr.mxu0 0.0
    %209 = vmatpush1.msra.mxu0 %v182
    %210 = vmatprep.subr.mxu0 0.0
    %211 = vmatpush1.msra.mxu0 %v183
    %212 = vmatprep.subr.mxu0 0.0
    %213 = vmatpush1.msra.mxu0 %v184
    %214 = vmatprep.subr.mxu0 0.0
    %215 = vmatpush1.msra.mxu0 %v185
    %216 = vmatprep.subr.mxu0 0.0
    %217 = vmatpush1.msra.mxu0 %v186
    %218 = vmatprep.subr.mxu0 0.0
    %219 = vmatpush1.msra.mxu0 %v187
    %220 = vmatprep.subr.mxu0 0.0
    %221 = vmatpush1.msra.mxu0 0.0
    %222 = vmatprep.subr.mxu0 0.0
    %223 = vmatpush1.msra.mxu0 0.0
    %224 = vmatprep.subr.mxu0 0.0
    %225 = vmatpush1.msra.mxu0 0.0
    %226 = vmatprep.subr.mxu0 0.0
    %227 = vmatpush1.msra.mxu0 0.0
    %228 = vmatprep.subr.mxu0 0.0
    %229 = vmatpush1.msra.mxu0 0.0
    %230 = vmatprep.subr.mxu0 0.0
    %231 = vmatpush1.msra.mxu0 0.0
    %232 = vmatprep.subr.mxu0 0.0
    %233 = vmatpush1.msra.mxu0 0.0
    %234 = vmatprep.subr.mxu0 0.0
    %235 = vmatpush1.msra.mxu0 0.0
    %236 = vmatprep.subr.mxu0 0.0
    %237 = vmatpush1.msra.mxu0 0.0
    %238 = vmatprep.subr.mxu0 0.0
    %239 = vmatpush1.msra.mxu0 0.0
    %240 = vmatprep.subr.mxu0 0.0
    %241 = vmatpush1.msra.mxu0 0.0
    %242 = vmatprep.subr.mxu0 0.0
    %243 = vmatpush1.msra.mxu0 0.0
    %244 = vmatprep.subr.mxu0 0.0
    %245 = vmatpush1.msra.mxu0 0.0
    %246 = vmatprep.subr.mxu0 0.0
    %247 = vmatpush1.msra.mxu0 0.0
    %248 = vmatprep.subr.mxu0 0.0
    %249 = vmatpush1.msra.mxu0 0.0
    %250 = vmatprep.subr.mxu0 0.0
    %251 = vmatpush1.msra.mxu0 0.0
    %252 = vmatprep.mubr.f32.mxu0 0.0
    %253 = vmatmul.mubr.f32.gmra.mrb[0].mxu0 %v165
    %v254 = vpop.f32.mrb[0].mxu0
    %v255 = vadd.f32 0.0, %v254
    %v256 = vpop.f32.mrb[0].mxu0
    %257 = vdwg.mxu0
    %v258 = vld [vmem:[#allocation5] sm:$0xff]
    %v259 = vld [vmem:[#allocation5 + $0x8] sm:$0xff]
    %v260 = vld [vmem:[#allocation5 + $0x10] sm:$0xff]
    %v261 = vld [vmem:[#allocation5 + $0x18] sm:$0xff]
    %v262 = vld [vmem:[#allocation5 + $0x20] sm:$0xff]
    %v263 = vld [vmem:[#allocation5 + $0x28] sm:$0xff]
    %v264 = vld [vmem:[#allocation5 + $0x30] sm:$0xff]
    %v265 = vld [vmem:[#allocation5 + $0x38] sm:$0xff]
    %v266 = vld [vmem:[#allocation5 + $0x40] sm:$0xff]
    %v267 = vld [vmem:[#allocation5 + $0x48] sm:$0xff]
    %v268 = vld [vmem:[#allocation5 + $0x50] sm:$0xff]
    %v269 = vld [vmem:[#allocation5 + $0x58] sm:$0xff]
    %v270 = vld [vmem:[#allocation5 + $0x60] sm:$0xff]
    %v271 = vld [vmem:[#allocation5 + $0x68] sm:$0xff]
    %v272 = vld [vmem:[#allocation5 + $0x70] sm:$0xff]
    %v273 = vld [vmem:[#allocation5 + $0x78] sm:$0xff]
    %274 = vmatprep.subr.mxu0 0.0
    %275 = vmatpush1.msra.mxu0 %v258
    %276 = vmatprep.subr.mxu0 0.0
    %277 = vmatpush1.msra.mxu0 %v259
    %278 = vmatprep.subr.mxu0 0.0
    %279 = vmatpush1.msra.mxu0 %v260
    %280 = vmatprep.subr.mxu0 0.0
    %281 = vmatpush1.msra.mxu0 %v261
    %282 = vmatprep.subr.mxu0 0.0
    %283 = vmatpush1.msra.mxu0 %v262
    %284 = vmatprep.subr.mxu0 0.0
    %285 = vmatpush1.msra.mxu0 %v263
    %286 = vmatprep.subr.mxu0 0.0
    %287 = vmatpush1.msra.mxu0 %v264
    %288 = vmatprep.subr.mxu0 0.0
    %289 = vmatpush1.msra.mxu0 %v265
    %290 = vmatprep.subr.mxu0 0.0
    %291 = vmatpush1.msra.mxu0 %v266
    %292 = vmatprep.subr.mxu0 0.0
    %293 = vmatpush1.msra.mxu0 %v267
    %294 = vmatprep.subr.mxu0 0.0
    %295 = vmatpush1.msra.mxu0 %v268
    %296 = vmatprep.subr.mxu0 0.0
    %297 = vmatpush1.msra.mxu0 %v269
    %298 = vmatprep.subr.mxu0 0.0
    %299 = vmatpush1.msra.mxu0 %v270
    %300 = vmatprep.subr.mxu0 0.0
    %301 = vmatpush1.msra.mxu0 %v271
    %302 = vmatprep.subr.mxu0 0.0
    %303 = vmatpush1.msra.mxu0 %v272
    %304 = vmatprep.subr.mxu0 0.0
    %305 = vmatpush1.msra.mxu0 %v273
    %306 = vmatprep.subr.mxu0 0.0
    %307 = vmatpush1.msra.mxu0 0.0
    %308 = vmatprep.subr.mxu0 0.0
    %309 = vmatpush1.msra.mxu0 0.0
    %310 = vmatprep.subr.mxu0 0.0
    %311 = vmatpush1.msra.mxu0 0.0
    %312 = vmatprep.subr.mxu0 0.0
    %313 = vmatpush1.msra.mxu0 0.0
    %314 = vmatprep.subr.mxu0 0.0
    %315 = vmatpush1.msra.mxu0 0.0
    %316 = vmatprep.subr.mxu0 0.0
    %317 = vmatpush1.msra.mxu0 0.0
    %318 = vmatprep.subr.mxu0 0.0
    %319 = vmatpush1.msra.mxu0 0.0
    %320 = vmatprep.subr.mxu0 0.0
    %321 = vmatpush1.msra.mxu0 0.0
    %322 = vmatprep.subr.mxu0 0.0
    %323 = vmatpush1.msra.mxu0 0.0
    %324 = vmatprep.subr.mxu0 0.0
    %325 = vmatpush1.msra.mxu0 0.0
    %326 = vmatprep.subr.mxu0 0.0
    %327 = vmatpush1.msra.mxu0 0.0
    %328 = vmatprep.subr.mxu0 0.0
    %329 = vmatpush1.msra.mxu0 0.0
    %330 = vmatprep.subr.mxu0 0.0
    %331 = vmatpush1.msra.mxu0 0.0
    %332 = vmatprep.subr.mxu0 0.0
    %333 = vmatpush1.msra.mxu0 0.0
    %334 = vmatprep.subr.mxu0 0.0
    %335 = vmatpush1.msra.mxu0 0.0
    %336 = vmatprep.subr.mxu0 0.0
    %337 = vmatpush1.msra.mxu0 0.0
    %338 = vmatprep.mubr.f32.mxu0 0.0
    %339 = vmatmul.mubr.f32.gmra.mrb[0].mxu0 %v171
    %v340 = vpop.f32.mrb[0].mxu0
    %v341 = vadd.f32 0.0, %v340
    %v342 = vpop.f32.mrb[0].mxu0
    %343 = vdwg.mxu0
    %v344 = vld [vmem:[#allocation7] sm:$0xff]
    %v345 = vld [vmem:[#allocation7 + $0x8] sm:$0xff]
    %v346 = vld [vmem:[#allocation7 + $0x10] sm:$0xff]
    %v347 = vld [vmem:[#allocation7 + $0x18] sm:$0xff]
    %v348 = vld [vmem:[#allocation7 + $0x20] sm:$0xff]
    %v349 = vld [vmem:[#allocation7 + $0x28] sm:$0xff]
    %v350 = vld [vmem:[#allocation7 + $0x30] sm:$0xff]
    %v351 = vld [vmem:[#allocation7 + $0x38] sm:$0xff]
    %v352 = vld [vmem:[#allocation7 + $0x40] sm:$0xff]
    %v353 = vld [vmem:[#allocation7 + $0x48] sm:$0xff]
    %v354 = vld [vmem:[#allocation7 + $0x50] sm:$0xff]
    %v355 = vld [vmem:[#allocation7 + $0x58] sm:$0xff]
    %v356 = vld [vmem:[#allocation7 + $0x60] sm:$0xff]
    %v357 = vld [vmem:[#allocation7 + $0x68] sm:$0xff]
    %v358 = vld [vmem:[#allocation7 + $0x70] sm:$0xff]
    %v359 = vld [vmem:[#allocation7 + $0x78] sm:$0xff]
    %v360 = vld [vmem:[#allocation8] sm:$0xff]
    %v361 = vld [vmem:[#allocation8 + $0x8] sm:$0xff]
    %v362 = vld [vmem:[#allocation8 + $0x10] sm:$0xff]
    %v363 = vld [vmem:[#allocation8 + $0x18] sm:$0xff]
    %v364 = vld [vmem:[#allocation8 + $0x20] sm:$0xff]
    %v365 = vld [vmem:[#allocation8 + $0x28] sm:$0xff]
    %v366 = vld [vmem:[#allocation8 + $0x30] sm:$0xff]
    %v367 = vld [vmem:[#allocation8 + $0x38] sm:$0xff]
    %v368 = vld [vmem:[#allocation8 + $0x40] sm:$0xff]
    %v369 = vld [vmem:[#allocation8 + $0x48] sm:$0xff]
    %v370 = vld [vmem:[#allocation8 + $0x50] sm:$0xff]
    %v371 = vld [vmem:[#allocation8 + $0x58] sm:$0xff]
    %v372 = vld [vmem:[#allocation8 + $0x60] sm:$0xff]
    %v373 = vld [vmem:[#allocation8 + $0x68] sm:$0xff]
    %v374 = vld [vmem:[#allocation8 + $0x70] sm:$0xff]
    %v375 = vld [vmem:[#allocation8 + $0x78] sm:$0xff]
    %376 = vmatprep.subr.mxu0 0.0
    %377 = vmatpush1.msra.mxu0 %v360
    %378 = vmatprep.subr.mxu0 0.0
    %379 = vmatpush1.msra.mxu0 %v361
    %380 = vmatprep.subr.mxu0 0.0
    %381 = vmatpush1.msra.mxu0 %v362
    %382 = vmatprep.subr.mxu0 0.0
    %383 = vmatpush1.msra.mxu0 %v363
    %384 = vmatprep.subr.mxu0 0.0
    %385 = vmatpush1.msra.mxu0 %v364
    %386 = vmatprep.subr.mxu0 0.0
    %387 = vmatpush1.msra.mxu0 %v365
    %388 = vmatprep.subr.mxu0 0.0
    %389 = vmatpush1.msra.mxu0 %v366
    %390 = vmatprep.subr.mxu0 0.0
    %391 = vmatpush1.msra.mxu0 %v367
    %392 = vmatprep.subr.mxu0 0.0
    %393 = vmatpush1.msra.mxu0 %v368
    %394 = vmatprep.subr.mxu0 0.0
    %395 = vmatpush1.msra.mxu0 %v369
    %396 = vmatprep.subr.mxu0 0.0
    %397 = vmatpush1.msra.mxu0 %v370
    %398 = vmatprep.subr.mxu0 0.0
    %399 = vmatpush1.msra.mxu0 %v371
    %400 = vmatprep.subr.mxu0 0.0
    %401 = vmatpush1.msra.mxu0 %v372
    %402 = vmatprep.subr.mxu0 0.0
    %403 = vmatpush1.msra.mxu0 %v373
    %404 = vmatprep.subr.mxu0 0.0
    %405 = vmatpush1.msra.mxu0 %v374
    %406 = vmatprep.subr.mxu0 0.0
    %407 = vmatpush1.msra.mxu0 %v375
    %408 = vmatprep.subr.mxu0 0.0
    %409 = vmatpush1.msra.mxu0 0.0
    %410 = vmatprep.subr.mxu0 0.0
    %411 = vmatpush1.msra.mxu0 0.0
    %412 = vmatprep.subr.mxu0 0.0
    %413 = vmatpush1.msra.mxu0 0.0
    %414 = vmatprep.subr.mxu0 0.0
    %415 = vmatpush1.msra.mxu0 0.0
    %416 = vmatprep.subr.mxu0 0.0
    %417 = vmatpush1.msra.mxu0 0.0
    %418 = vmatprep.subr.mxu0 0.0
    %419 = vmatpush1.msra.mxu0 0.0
    %420 = vmatprep.subr.mxu0 0.0
    %421 = vmatpush1.msra.mxu0 0.0
    %422 = vmatprep.subr.mxu0 0.0
    %423 = vmatpush1.msra.mxu0 0.0
    %424 = vmatprep.subr.mxu0 0.0
    %425 = vmatpush1.msra.mxu0 0.0
    %426 = vmatprep.subr.mxu0 0.0
    %427 = vmatpush1.msra.mxu0 0.0
    %428 = vmatprep.subr.mxu0 0.0
    %429 = vmatpush1.msra.mxu0 0.0
    %430 = vmatprep.subr.mxu0 0.0
    %431 = vmatpush1.msra.mxu0 0.0
    %432 = vmatprep.subr.mxu0 0.0
    %433 = vmatpush1.msra.mxu0 0.0
    %434 = vmatprep.subr.mxu0 0.0
    %435 = vmatpush1.msra.mxu0 0.0
    %436 = vmatprep.subr.mxu0 0.0
    %437 = vmatpush1.msra.mxu0 0.0
    %438 = vmatprep.subr.mxu0 0.0
    %439 = vmatpush1.msra.mxu0 0.0
    %440 = vmatprep.mubr.f32.mxu0 0.0
    %441 = vmatmul.mubr.f32.gmra.mrb[0].mxu0 %v341
    %v442 = vpop.f32.mrb[0].mxu0
    %v443 = vadd.f32 0.0, %v442
    %v444 = vpop.f32.mrb[0].mxu0
    %445 = vdwg.mxu0
    %446 = vmatprep.subr.mxu0 0.0
    %447 = vmatpush1.msra.mxu0 %v344
    %448 = vmatprep.subr.mxu0 0.0
    %449 = vmatpush1.msra.mxu0 %v345
    %450 = vmatprep.subr.mxu0 0.0
    %451 = vmatpush1.msra.mxu0 %v346
    %452 = vmatprep.subr.mxu0 0.0
    %453 = vmatpush1.msra.mxu0 %v347
    %454 = vmatprep.subr.mxu0 0.0
    %455 = vmatpush1.msra.mxu0 %v348
    %456 = vmatprep.subr.mxu0 0.0
    %457 = vmatpush1.msra.mxu0 %v349
    %458 = vmatprep.subr.mxu0 0.0
    %459 = vmatpush1.msra.mxu0 %v350
    %460 = vmatprep.subr.mxu0 0.0
    %461 = vmatpush1.msra.mxu0 %v351
    %462 = vmatprep.subr.mxu0 0.0
    %463 = vmatpush1.msra.mxu0 %v352
    %464 = vmatprep.subr.mxu0 0.0
    %465 = vmatpush1.msra.mxu0 %v353
    %466 = vmatprep.subr.mxu0 0.0
    %467 = vmatpush1.msra.mxu0 %v354
    %468 = vmatprep.subr.mxu0 0.0
    %469 = vmatpush1.msra.mxu0 %v355
    %470 = vmatprep.subr.mxu0 0.0
    %471 = vmatpush1.msra.mxu0 %v356
    %472 = vmatprep.subr.mxu0 0.0
    %473 = vmatpush1.msra.mxu0 %v357
    %474 = vmatprep.subr.mxu0 0.0
    %475 = vmatpush1.msra.mxu0 %v358
    %476 = vmatprep.subr.mxu0 0.0
    %477 = vmatpush1.msra.mxu0 %v359
    %478 = vmatprep.subr.mxu0 0.0
    %479 = vmatpush1.msra.mxu0 0.0
    %480 = vmatprep.subr.mxu0 0.0
    %481 = vmatpush1.msra.mxu0 0.0
    %482 = vmatprep.subr.mxu0 0.0
    %483 = vmatpush1.msra.mxu0 0.0
    %484 = vmatprep.subr.mxu0 0.0
    %485 = vmatpush1.msra.mxu0 0.0
    %486 = vmatprep.subr.mxu0 0.0
    %487 = vmatpush1.msra.mxu0 0.0
    %488 = vmatprep.subr.mxu0 0.0
    %489 = vmatpush1.msra.mxu0 0.0
    %490 = vmatprep.subr.mxu0 0.0
    %491 = vmatpush1.msra.mxu0 0.0
    %492 = vmatprep.subr.mxu0 0.0
    %493 = vmatpush1.msra.mxu0 0.0
    %494 = vmatprep.subr.mxu0 0.0
    %495 = vmatpush1.msra.mxu0 0.0
    %496 = vmatprep.subr.mxu0 0.0
    %497 = vmatpush1.msra.mxu0 0.0
    %498 = vmatprep.subr.mxu0 0.0
    %499 = vmatpush1.msra.mxu0 0.0
    %500 = vmatprep.subr.mxu0 0.0
    %501 = vmatpush1.msra.mxu0 0.0
    %502 = vmatprep.subr.mxu0 0.0
    %503 = vmatpush1.msra.mxu0 0.0
    %504 = vmatprep.subr.mxu0 0.0
    %505 = vmatpush1.msra.mxu0 0.0
    %506 = vmatprep.subr.mxu0 0.0
    %507 = vmatpush1.msra.mxu0 0.0
    %508 = vmatprep.subr.mxu0 0.0
    %509 = vmatpush1.msra.mxu0 0.0
    %510 = vmatprep.mubr.f32.mxu0 0.0
    %511 = vmatmul.mubr.f32.gmra.mrb[0].mxu0 %v255
    %v512 = vpop.f32.mrb[0].mxu0
    %v513 = vadd.f32 %v443, %v512
    %v514 = vpop.f32.mrb[0].mxu0
    %515 = vdwg.mxu0
    %v516 = vld [vmem:[%s1] sm:$0xff]
    %v517 = vld [vmem:[#allocation10] sm:$0xff]
    %v518 = vld [vmem:[#allocation10 + $0x8] sm:$0xff]
    %v519 = vld [vmem:[#allocation10 + $0x10] sm:$0xff]
    %v520 = vld [vmem:[#allocation10 + $0x18] sm:$0xff]
    %v521 = vld [vmem:[#allocation10 + $0x20] sm:$0xff]
    %v522 = vld [vmem:[#allocation10 + $0x28] sm:$0xff]
    %v523 = vld [vmem:[#allocation10 + $0x30] sm:$0xff]
    %v524 = vld [vmem:[#allocation10 + $0x38] sm:$0xff]
    %v525 = vld [vmem:[#allocation10 + $0x40] sm:$0xff]
    %v526 = vld [vmem:[#allocation10 + $0x48] sm:$0xff]
    %v527 = vld [vmem:[#allocation10 + $0x50] sm:$0xff]
    %v528 = vld [vmem:[#allocation10 + $0x58] sm:$0xff]
    %v529 = vld [vmem:[#allocation10 + $0x60] sm:$0xff]
    %v530 = vld [vmem:[#allocation10 + $0x68] sm:$0xff]
    %v531 = vld [vmem:[#allocation10 + $0x70] sm:$0xff]
    %v532 = vld [vmem:[#allocation10 + $0x78] sm:$0xff]
    %533 = vmatprep.subr.mxu0 0.0
    %534 = vmatpush1.msra.mxu0 %v517
    %535 = vmatprep.subr.mxu0 0.0
    %536 = vmatpush1.msra.mxu0 %v518
    %537 = vmatprep.subr.mxu0 0.0
    %538 = vmatpush1.msra.mxu0 %v519
    %539 = vmatprep.subr.mxu0 0.0
    %540 = vmatpush1.msra.mxu0 %v520
    %541 = vmatprep.subr.mxu0 0.0
    %542 = vmatpush1.msra.mxu0 %v521
    %543 = vmatprep.subr.mxu0 0.0
    %544 = vmatpush1.msra.mxu0 %v522
    %545 = vmatprep.subr.mxu0 0.0
    %546 = vmatpush1.msra.mxu0 %v523
    %547 = vmatprep.subr.mxu0 0.0
    %548 = vmatpush1.msra.mxu0 %v524
    %549 = vmatprep.subr.mxu0 0.0
    %550 = vmatpush1.msra.mxu0 %v525
    %551 = vmatprep.subr.mxu0 0.0
    %552 = vmatpush1.msra.mxu0 %v526
    %553 = vmatprep.subr.mxu0 0.0
    %554 = vmatpush1.msra.mxu0 %v527
    %555 = vmatprep.subr.mxu0 0.0
    %556 = vmatpush1.msra.mxu0 %v528
    %557 = vmatprep.subr.mxu0 0.0
    %558 = vmatpush1.msra.mxu0 %v529
    %559 = vmatprep.subr.mxu0 0.0
    %560 = vmatpush1.msra.mxu0 %v530
    %561 = vmatprep.subr.mxu0 0.0
    %562 = vmatpush1.msra.mxu0 %v531
    %563 = vmatprep.subr.mxu0 0.0
    %564 = vmatpush1.msra.mxu0 %v532
    %565 = vmatprep.subr.mxu0 0.0
    %566 = vmatpush1.msra.mxu0 0.0
    %567 = vmatprep.subr.mxu0 0.0
    %568 = vmatpush1.msra.mxu0 0.0
    %569 = vmatprep.subr.mxu0 0.0
    %570 = vmatpush1.msra.mxu0 0.0
    %571 = vmatprep.subr.mxu0 0.0
    %572 = vmatpush1.msra.mxu0 0.0
    %573 = vmatprep.subr.mxu0 0.0
    %574 = vmatpush1.msra.mxu0 0.0
    %575 = vmatprep.subr.mxu0 0.0
    %576 = vmatpush1.msra.mxu0 0.0
    %577 = vmatprep.subr.mxu0 0.0
    %578 = vmatpush1.msra.mxu0 0.0
    %579 = vmatprep.subr.mxu0 0.0
    %580 = vmatpush1.msra.mxu0 0.0
    %581 = vmatprep.subr.mxu0 0.0
    %582 = vmatpush1.msra.mxu0 0.0
    %583 = vmatprep.subr.mxu0 0.0
    %584 = vmatpush1.msra.mxu0 0.0
    %585 = vmatprep.subr.mxu0 0.0
    %586 = vmatpush1.msra.mxu0 0.0
    %587 = vmatprep.subr.mxu0 0.0
    %588 = vmatpush1.msra.mxu0 0.0
    %589 = vmatprep.subr.mxu0 0.0
    %590 = vmatpush1.msra.mxu0 0.0
    %591 = vmatprep.subr.mxu0 0.0
    %592 = vmatpush1.msra.mxu0 0.0
    %593 = vmatprep.subr.mxu0 0.0
    %594 = vmatpush1.msra.mxu0 0.0
    %595 = vmatprep.subr.mxu0 0.0
    %596 = vmatpush1.msra.mxu0 0.0
    %597 = vmatprep.mubr.f32.mxu0 0.0
    %598 = vmatmul.mubr.f32.gmra.mrb[0].mxu0 %v516
    %v599 = vpop.f32.mrb[0].mxu0
    %v600 = vadd.f32 0.0, %v599
    %v601 = vpop.f32.mrb[0].mxu0
    %602 = vdwg.mxu0
    %v603 = vadd.f32 %v513, %v600
    %v604 = vld [vmem:[%s7] sm:$0x1]
    %v606 = vlaneseq
    %v607 = vshrl.u32 %v606, 7
    %v608 = vsub.s32 0, %v607
    %v609 = vrot.slane %v604, %v608
    %v611 = vadd.f32 %v603, %v609
    %v612 = vmax.f32 %v611, 0.0
    %v613 = vld [vmem:[#allocation11] sm:$0xff]
    %v614 = vld [vmem:[#allocation11 + $0x8] sm:$0xff]
    %v615 = vld [vmem:[#allocation11 + $0x10] sm:$0xff]
    %v616 = vld [vmem:[#allocation11 + $0x18] sm:$0xff]
    %v617 = vld [vmem:[#allocation11 + $0x20] sm:$0xff]
    %v618 = vld [vmem:[#allocation11 + $0x28] sm:$0xff]
    %v619 = vld [vmem:[#allocation11 + $0x30] sm:$0xff]
    %v620 = vld [vmem:[#allocation11 + $0x38] sm:$0xff]
    %v621 = vld [vmem:[#allocation11 + $0x40] sm:$0xff]
    %v622 = vld [vmem:[#allocation11 + $0x48] sm:$0xff]
    %v623 = vld [vmem:[#allocation11 + $0x50] sm:$0xff]
    %v624 = vld [vmem:[#allocation11 + $0x58] sm:$0xff]
    %v625 = vld [vmem:[#allocation11 + $0x60] sm:$0xff]
    %v626 = vld [vmem:[#allocation11 + $0x68] sm:$0xff]
    %v627 = vld [vmem:[#allocation11 + $0x70] sm:$0xff]
    %v628 = vld [vmem:[#allocation11 + $0x78] sm:$0xff]
    %v629 = vld [vmem:[%s9] sm:$0x1]
    %v631 = vlaneseq
    %v632 = vshrl.u32 %v631, 7
    %v633 = vsub.s32 0, %v632
    %v634 = vrot.slane %v629, %v633
    %636 = vmatprep.subr.mxu0 0.0
    %637 = vmatpush1.msra.mxu0 %v613
    %638 = vmatprep.subr.mxu0 0.0
    %639 = vmatpush1.msra.mxu0 %v614
    %640 = vmatprep.subr.mxu0 0.0
    %641 = vmatpush1.msra.mxu0 %v615
    %642 = vmatprep.subr.mxu0 0.0
    %643 = vmatpush1.msra.mxu0 %v616
    %644 = vmatprep.subr.mxu0 0.0
    %645 = vmatpush1.msra.mxu0 %v617
    %646 = vmatprep.subr.mxu0 0.0
    %647 = vmatpush1.msra.mxu0 %v618
    %648 = vmatprep.subr.mxu0 0.0
    %649 = vmatpush1.msra.mxu0 %v619
    %650 = vmatprep.subr.mxu0 0.0
    %651 = vmatpush1.msra.mxu0 %v620
    %652 = vmatprep.subr.mxu0 0.0
    %653 = vmatpush1.msra.mxu0 %v621
    %654 = vmatprep.subr.mxu0 0.0
    %655 = vmatpush1.msra.mxu0 %v622
    %656 = vmatprep.subr.mxu0 0.0
    %657 = vmatpush1.msra.mxu0 %v623
    %658 = vmatprep.subr.mxu0 0.0
    %659 = vmatpush1.msra.mxu0 %v624
    %660 = vmatprep.subr.mxu0 0.0
    %661 = vmatpush1.msra.mxu0 %v625
    %662 = vmatprep.subr.mxu0 0.0
    %663 = vmatpush1.msra.mxu0 %v626
    %664 = vmatprep.subr.mxu0 0.0
    %665 = vmatpush1.msra.mxu0 %v627
    %666 = vmatprep.subr.mxu0 0.0
    %667 = vmatpush1.msra.mxu0 %v628
    %668 = vmatprep.subr.mxu0 0.0
    %669 = vmatpush1.msra.mxu0 0.0
    %670 = vmatprep.subr.mxu0 0.0
    %671 = vmatpush1.msra.mxu0 0.0
    %672 = vmatprep.subr.mxu0 0.0
    %673 = vmatpush1.msra.mxu0 0.0
    %674 = vmatprep.subr.mxu0 0.0
    %675 = vmatpush1.msra.mxu0 0.0
    %676 = vmatprep.subr.mxu0 0.0
    %677 = vmatpush1.msra.mxu0 0.0
    %678 = vmatprep.subr.mxu0 0.0
    %679 = vmatpush1.msra.mxu0 0.0
    %680 = vmatprep.subr.mxu0 0.0
    %681 = vmatpush1.msra.mxu0 0.0
    %682 = vmatprep.subr.mxu0 0.0
    %683 = vmatpush1.msra.mxu0 0.0
    %684 = vmatprep.subr.mxu0 0.0
    %685 = vmatpush1.msra.mxu0 0.0
    %686 = vmatprep.subr.mxu0 0.0
    %687 = vmatpush1.msra.mxu0 0.0
    %688 = vmatprep.subr.mxu0 0.0
    %689 = vmatpush1.msra.mxu0 0.0
    %690 = vmatprep.subr.mxu0 0.0
    %691 = vmatpush1.msra.mxu0 0.0
    %692 = vmatprep.subr.mxu0 0.0
    %693 = vmatpush1.msra.mxu0 0.0
    %694 = vmatprep.subr.mxu0 0.0
    %695 = vmatpush1.msra.mxu0 0.0
    %696 = vmatprep.subr.mxu0 0.0
    %697 = vmatpush1.msra.mxu0 0.0
    %698 = vmatprep.subr.mxu0 0.0
    %699 = vmatpush1.msra.mxu0 0.0
    %700 = vmatprep.mubr.f32.mxu0 0.0
    %701 = vmatmul.mubr.f32.gmra.mrb[0].mxu0 %v612
    %v702 = vpop.f32.mrb[0].mxu0
    %v703 = vadd.f32 %v634, %v702
    %v704 = vpop.f32.mrb[0].mxu0
    %705 = vdwg.mxu0
    %v706 = vtanh.pop %v703
    %v707 = vld [vmem:[#allocation13] sm:$0xff]
    %v708 = vld [vmem:[#allocation13 + $0x8] sm:$0xff]
    %v709 = vld [vmem:[#allocation13 + $0x10] sm:$0xff]
    %v710 = vld [vmem:[#allocation13 + $0x18] sm:$0xff]
    %v711 = vld [vmem:[#allocation13 + $0x20] sm:$0xff]
    %v712 = vld [vmem:[#allocation13 + $0x28] sm:$0xff]
    %v713 = vld [vmem:[#allocation13 + $0x30] sm:$0xff]
    %v714 = vld [vmem:[#allocation13 + $0x38] sm:$0xff]
    %v715 = vld [vmem:[#allocation13 + $0x40] sm:$0xff]
    %v716 = vld [vmem:[#allocation13 + $0x48] sm:$0xff]
    %v717 = vld [vmem:[#allocation13 + $0x50] sm:$0xff]
    %v718 = vld [vmem:[#allocation13 + $0x58] sm:$0xff]
    %v719 = vld [vmem:[#allocation13 + $0x60] sm:$0xff]
    %v720 = vld [vmem:[#allocation13 + $0x68] sm:$0xff]
    %v721 = vld [vmem:[#allocation13 + $0x70] sm:$0xff]
    %v722 = vld [vmem:[#allocation13 + $0x78] sm:$0xff]
    %v723 = vld [vmem:[%s11] sm:$0x1]
    %v725 = vlaneseq
    %v726 = vshrl.u32 %v725, 7
    %v727 = vsub.s32 0, %v726
    %v728 = vrot.slane %v723, %v727
    %730 = vmatprep.subr.mxu0 0.0
    %731 = vmatpush1.msra.mxu0 %v707
    %732 = vmatprep.subr.mxu0 0.0
    %733 = vmatpush1.msra.mxu0 %v708
    %734 = vmatprep.subr.mxu0 0.0
    %735 = vmatpush1.msra.mxu0 %v709
    %736 = vmatprep.subr.mxu0 0.0
    %737 = vmatpush1.msra.mxu0 %v710
    %738 = vmatprep.subr.mxu0 0.0
    %739 = vmatpush1.msra.mxu0 %v711
    %740 = vmatprep.subr.mxu0 0.0
    %741 = vmatpush1.msra.mxu0 %v712
    %742 = vmatprep.subr.mxu0 0.0
    %743 = vmatpush1.msra.mxu0 %v713
    %744 = vmatprep.subr.mxu0 0.0
    %745 = vmatpush1.msra.mxu0 %v714
    %746 = vmatprep.subr.mxu0 0.0
    %747 = vmatpush1.msra.mxu0 %v715
    %748 = vmatprep.subr.mxu0 0.0
    %749 = vmatpush1.msra.mxu0 %v716
    %750 = vmatprep.subr.mxu0 0.0
    %751 = vmatpush1.msra.mxu0 %v717
    %752 = vmatprep.subr.mxu0 0.0
    %753 = vmatpush1.msra.mxu0 %v718
    %754 = vmatprep.subr.mxu0 0.0
    %755 = vmatpush1.msra.mxu0 %v719
    %756 = vmatprep.subr.mxu0 0.0
    %757 = vmatpush1.msra.mxu0 %v720
    %758 = vmatprep.subr.mxu0 0.0
    %759 = vmatpush1.msra.mxu0 %v721
    %760 = vmatprep.subr.mxu0 0.0
    %761 = vmatpush1.msra.mxu0 %v722
    %762 = vmatprep.subr.mxu0 0.0
    %763 = vmatpush1.msra.mxu0 0.0
    %764 = vmatprep.subr.mxu0 0.0
    %765 = vmatpush1.msra.mxu0 0.0
    %766 = vmatprep.subr.mxu0 0.0
    %767 = vmatpush1.msra.mxu0 0.0
    %768 = vmatprep.subr.mxu0 0.0
    %769 = vmatpush1.msra.mxu0 0.0
    %770 = vmatprep.subr.mxu0 0.0
    %771 = vmatpush1.msra.mxu0 0.0
    %772 = vmatprep.subr.mxu0 0.0
    %773 = vmatpush1.msra.mxu0 0.0
    %774 = vmatprep.subr.mxu0 0.0
    %775 = vmatpush1.msra.mxu0 0.0
    %776 = vmatprep.subr.mxu0 0.0
    %777 = vmatpush1.msra.mxu0 0.0
    %778 = vmatprep.subr.mxu0 0.0
    %779 = vmatpush1.msra.mxu0 0.0
    %780 = vmatprep.subr.mxu0 0.0
    %781 = vmatpush1.msra.mxu0 0.0
    %782 = vmatprep.subr.mxu0 0.0
    %783 = vmatpush1.msra.mxu0 0.0
    %784 = vmatprep.subr.mxu0 0.0
    %785 = vmatpush1.msra.mxu0 0.0
    %786 = vmatprep.subr.mxu0 0.0
    %787 = vmatpush1.msra.mxu0 0.0
    %788 = vmatprep.subr.mxu0 0.0
    %789 = vmatpush1.msra.mxu0 0.0
    %790 = vmatprep.subr.mxu0 0.0
    %791 = vmatpush1.msra.mxu0 0.0
    %792 = vmatprep.subr.mxu0 0.0
    %793 = vmatpush1.msra.mxu0 0.0
    %794 = vmatprep.mubr.f32.mxu0 0.0
    %795 = vmatmul.mubr.f32.gmra.mrb[0].mxu0 %v706
    %v796 = vpop.f32.mrb[0].mxu0
    %v797 = vadd.f32 %v728, %v796
    %v798 = vpop.f32.mrb[0].mxu0
    %799 = vdwg.mxu0
    %v800 = vxor.u32 %v797, 2147483648
    %v801 = vmul.f32 %v800, 1.442695
    %v802 = vpow.pop %v801
    %v803 = vadd.f32 %v802, 1.0
    %v804 = vrcp.pop %v803
    %v805 = vmul.f32 1.0, %v804
    %v806 = vld [vmem:[#allocation14] sm:$0xff]
    %v807 = vld [vmem:[#allocation14 + $0x8] sm:$0xff]
    %v808 = vld [vmem:[#allocation14 + $0x10] sm:$0xff]
    %v809 = vld [vmem:[#allocation14 + $0x18] sm:$0xff]
    %v810 = vld [vmem:[#allocation14 + $0x20] sm:$0xff]
    %v811 = vld [vmem:[#allocation14 + $0x28] sm:$0xff]
    %v812 = vld [vmem:[#allocation14 + $0x30] sm:$0xff]
    %v813 = vld [vmem:[#allocation14 + $0x38] sm:$0xff]
    %v814 = vld [vmem:[#allocation14 + $0x40] sm:$0xff]
    %v815 = vld [vmem:[#allocation14 + $0x48] sm:$0xff]
    %v816 = vld [vmem:[#allocation14 + $0x50] sm:$0xff]
    %v817 = vld [vmem:[#allocation14 + $0x58] sm:$0xff]
    %v818 = vld [vmem:[#allocation14 + $0x60] sm:$0xff]
    %v819 = vld [vmem:[#allocation14 + $0x68] sm:$0xff]
    %v820 = vld [vmem:[#allocation14 + $0x70] sm:$0xff]
    %v821 = vld [vmem:[#allocation14 + $0x78] sm:$0xff]
    %v822 = vld [vmem:[%s13] sm:$0x1]
    %v824 = vlaneseq
    %v825 = vshrl.u32 %v824, 7
    %v826 = vsub.s32 0, %v825
    %v827 = vrot.slane %v822, %v826
    %829 = vmatprep.subr.mxu0 0.0
    %830 = vmatpush1.msra.mxu0 %v806
    %831 = vmatprep.subr.mxu0 0.0
    %832 = vmatpush1.msra.mxu0 %v807
    %833 = vmatprep.subr.mxu0 0.0
    %834 = vmatpush1.msra.mxu0 %v808
    %835 = vmatprep.subr.mxu0 0.0
    %836 = vmatpush1.msra.mxu0 %v809
    %837 = vmatprep.subr.mxu0 0.0
    %838 = vmatpush1.msra.mxu0 %v810
    %839 = vmatprep.subr.mxu0 0.0
    %840 = vmatpush1.msra.mxu0 %v811
    %841 = vmatprep.subr.mxu0 0.0
    %842 = vmatpush1.msra.mxu0 %v812
    %843 = vmatprep.subr.mxu0 0.0
    %844 = vmatpush1.msra.mxu0 %v813
    %845 = vmatprep.subr.mxu0 0.0
    %846 = vmatpush1.msra.mxu0 %v814
    %847 = vmatprep.subr.mxu0 0.0
    %848 = vmatpush1.msra.mxu0 %v815
    %849 = vmatprep.subr.mxu0 0.0
    %850 = vmatpush1.msra.mxu0 %v816
    %851 = vmatprep.subr.mxu0 0.0
    %852 = vmatpush1.msra.mxu0 %v817
    %853 = vmatprep.subr.mxu0 0.0
    %854 = vmatpush1.msra.mxu0 %v818
    %855 = vmatprep.subr.mxu0 0.0
    %856 = vmatpush1.msra.mxu0 %v819
    %857 = vmatprep.subr.mxu0 0.0
    %858 = vmatpush1.msra.mxu0 %v820
    %859 = vmatprep.subr.mxu0 0.0
    %860 = vmatpush1.msra.mxu0 %v821
    %861 = vmatprep.subr.mxu0 0.0
    %862 = vmatpush1.msra.mxu0 0.0
    %863 = vmatprep.subr.mxu0 0.0
    %864 = vmatpush1.msra.mxu0 0.0
    %865 = vmatprep.subr.mxu0 0.0
    %866 = vmatpush1.msra.mxu0 0.0
    %867 = vmatprep.subr.mxu0 0.0
    %868 = vmatpush1.msra.mxu0 0.0
    %869 = vmatprep.subr.mxu0 0.0
    %870 = vmatpush1.msra.mxu0 0.0
    %871 = vmatprep.subr.mxu0 0.0
    %872 = vmatpush1.msra.mxu0 0.0
    %873 = vmatprep.subr.mxu0 0.0
    %874 = vmatpush1.msra.mxu0 0.0
    %875 = vmatprep.subr.mxu0 0.0
    %876 = vmatpush1.msra.mxu0 0.0
    %877 = vmatprep.subr.mxu0 0.0
    %878 = vmatpush1.msra.mxu0 0.0
    %879 = vmatprep.subr.mxu0 0.0
    %880 = vmatpush1.msra.mxu0 0.0
    %881 = vmatprep.subr.mxu0 0.0
    %882 = vmatpush1.msra.mxu0 0.0
    %883 = vmatprep.subr.mxu0 0.0
    %884 = vmatpush1.msra.mxu0 0.0
    %885 = vmatprep.subr.mxu0 0.0
    %886 = vmatpush1.msra.mxu0 0.0
    %887 = vmatprep.subr.mxu0 0.0
    %888 = vmatpush1.msra.mxu0 0.0
    %889 = vmatprep.subr.mxu0 0.0
    %890 = vmatpush1.msra.mxu0 0.0
    %891 = vmatprep.subr.mxu0 0.0
    %892 = vmatpush1.msra.mxu0 0.0
    %893 = vmatprep.mubr.f32.mxu0 0.0
    %894 = vmatmul.mubr.f32.gmra.mrb[0].mxu0 %v805
    %v895 = vpop.f32.mrb[0].mxu0
    %v896 = vadd.f32 %v827, %v895
    %v897 = vpop.f32.mrb[0].mxu0
    %898 = vdwg.mxu0
    %899 = vst [vmem:[#allocation16] sm:$0xff] %v896
    // Predicated region
    $region90: #{tpu_custom_call.1} parent=1 // pred_check
      _
    $region91: #{tpu_custom_call.1} parent=1 // pred_check_branch
      %901 = sbr.rel (0) target = $region93
    $region92: #{tpu_custom_call.1} parent=1 // pred_region
      %s903 = ssub.s32 128, 128
      %904 = vsyncadd [#allocation4], %s903
      %s906 = sshll.u32 [#allocation16], 4
      %s907 = int_to_ptr.vmem [resolvable:$true] %s906
      %909 = dma.vmem_to_hbm [thread:$0]  %s907, 128, %s14, [#allocation4]
    $region93: #{tpu_custom_call.1} parent=1 // pred_fallthru
      _
    // Predicated region
    $region94: #{tpu_custom_call.1} parent=1 // pred_check
      _
    $region95: #{tpu_custom_call.1} parent=1 // pred_check_branch
      %911 = sbr.rel (0) target = $region97
    $region96: #{tpu_custom_call.1} parent=1 // pred_region
      %912 = dma.done [#allocation4], 128
    $region97: #{tpu_custom_call.1} parent=1 // pred_fallthru
      _
    %913 = vsyncpa [#allocation3], 1
    %914 = vsyncpa [#allocation6], 1
    %915 = vsyncpa [#allocation9], 1
    %916 = vsyncpa [#allocation12], 1
    %917 = vsyncpa [#allocation15], 1
    %918 = vsyncpa [#allocation4], 1

</llo_original>
